<compile_context>
chip_gen: v7x
topology: tpu7x:2x2x1
jax: 0.10.0
libtpu: 0.0.40
codegen_flags: <defaults>
</compile_context>

<pallas_src>
import functools

import jax
import jax.numpy as jnp
from jax import lax
from jax.experimental import pallas as pl
from jax.experimental.pallas import tpu as pltpu

BN_EPS = 1e-5
NEG_SLOPE = 0.1
LANE = 128
SUBLANE = 8


def _round_up(n, m):
    return ((n + m - 1) // m) * m


def _leaky(x):
    # identical to where(x>0, x, 0.1*x) for 0 < slope < 1
    return jnp.maximum(x, NEG_SLOPE * x)


# --------------------------------------------------------------------------
# Stage 1 (stats-only, recompute path): per-tile BN statistics of d = x @ W1
# --------------------------------------------------------------------------
def _stage1_stats_kernel(x_ref, w1_ref, stats_ref):
    d = jnp.dot(x_ref[...], w1_ref[...], preferred_element_type=jnp.float32)
    # bias-shifted stats: padded (all-zero) rows contribute exactly 0.
    stats_ref[0, 0:1, :] = jnp.sum(d, axis=0, keepdims=True)
    stats_ref[0, 1:2, :] = jnp.sum(d * d, axis=0, keepdims=True)


# --------------------------------------------------------------------------
# Stage 1 (materialized path, v5e): also store h1 = x @ W1 + b1 in bf16
# --------------------------------------------------------------------------
def _stage1_h1_kernel(x_ref, w1_ref, b1_ref, h1_ref, stats_ref):
    d = jnp.dot(x_ref[...], w1_ref[...], preferred_element_type=jnp.float32)
    h1_ref[...] = (d + b1_ref[...]).astype(h1_ref.dtype)       # bf16 store
    stats_ref[0, 0:1, :] = jnp.sum(d, axis=0, keepdims=True)
    stats_ref[0, 1:2, :] = jnp.sum(d * d, axis=0, keepdims=True)


# --------------------------------------------------------------------------
# Stage 2: (recompute h1 | load bf16 h1) -> folded BN -> LeakyReLU -> W2
#          -> LeakyReLU -> W3 + residual Wr + fused bias
# --------------------------------------------------------------------------
def _stage2_kernel(recompute, *refs):
    if recompute:
        (x_ref, w1_ref, rows_ref, w2_ref, w3_ref, wr_ref, bcat_ref,
         o_ref) = refs
        # b1 is folded into the BN shift row on the host.
        h1 = jnp.dot(x_ref[...], w1_ref[...],
                     preferred_element_type=jnp.float32)
    else:
        (h1_ref, x_ref, rows_ref, w2_ref, w3_ref, wr_ref, bcat_ref,
         o_ref) = refs
        h1 = h1_ref[...].astype(jnp.float32)

    scale = rows_ref[0:1, :]
    shift = rows_ref[1:2, :]
    b2 = rows_ref[2:3, :]

    # BN folded to scale/shift, LeakyReLU — all elementwise math in f32.
    h = _leaky(h1 * scale + shift)

    h2 = jnp.dot(h.astype(jnp.bfloat16), w2_ref[...],
                 preferred_element_type=jnp.float32) + b2
    h2 = _leaky(h2)

    out = jnp.dot(h2.astype(jnp.bfloat16), w3_ref[...],
                  preferred_element_type=jnp.float32)
    out = out + jnp.dot(x_ref[...], wr_ref[...],
                        preferred_element_type=jnp.float32)
    out = out + bcat_ref[...]                          # b3 + br (fused)
    o_ref[...] = out.astype(o_ref.dtype)


# --------------------------------------------------------------------------
# Tiling / VMEM sizing helpers
# --------------------------------------------------------------------------
def _choose_block_batch(batch):
    """Largest tile (cap 512) whose row padding stays small."""
    b8 = _round_up(max(batch, 1), SUBLANE)
    for tb in (512, 256, 128, 64, 32, 16, 8):
        waste = _round_up(b8, tb) - b8
        if waste <= tb // 2 and waste <= max(b8 // 8, SUBLANE):
            return tb
    return SUBLANE


def _stage2_vmem_bytes(tb, in_p, h_p, out_p, recompute, weight_bufs):
    """Rough stage-2 VMEM working set (stage 1 is strictly smaller)."""
    bf, f = 2, 4
    n = 2 * tb * in_p * bf                                   # x tile (x2 bufs)
    if recompute:
        n += weight_bufs * in_p * h_p * bf                   # resident W1
    else:
        n += 2 * tb * h_p * bf                               # bf16 h1 tile
    n += 2 * tb * out_p * f                                  # out tile (x2)
    n += weight_bufs * (h_p * h_p + h_p * out_p + in_p * out_p) * bf
    n += 2 * (SUBLANE * h_p + SUBLANE * out_p) * f           # rows / bcat
    n += tb * (2 * h_p + out_p) * f                          # f32 temporaries
    return n


def _const_spec(shape, single_buffer):
    """BlockSpec for a grid-invariant (weight) operand."""
    index_map = lambda i: (0,) * len(shape)
    if single_buffer:
        # v7x / large hidden: constant weights never change across the grid, so
        # a single buffer halves their VMEM footprint (64 MiB physical VMEM).
        return pl.BlockSpec(shape, index_map, pipeline_mode=pl.Buffered(1))
    return pl.BlockSpec(shape, index_map)


# --------------------------------------------------------------------------
# Forward
# --------------------------------------------------------------------------
@functools.partial(jax.jit, static_argnames=("block_batch", "materialize_h1"))
def residual_block_forward(x, params, block_batch=None, materialize_h1=None):
    """x: (B, input_size) float32. params: dict of f32 weights stored (in, out)."""
    batch, in_size = x.shape
    hidden = params["w1"].shape[1]
    out_size = params["w3"].shape[1]

    in_p = _round_up(in_size, LANE)
    h_p = _round_up(hidden, LANE)
    out_p = _round_up(out_size, LANE)

    kind = jax.devices()[0].device_kind.lower()
    is_v7x = "v7" in kind
    if materialize_h1 is None:
        # v5e is closer to compute-bound at this intensity -> keep bf16 h1 in
        # HBM; v6e/v7x are HBM-bound -> recompute h1 in stage 2 instead.
        materialize_h1 = "v5" in kind
    recompute = not materialize_h1

    # Single-buffer the resident weights only where the 64 MiB v7x VMEM needs it.
    single_w = is_v7x and h_p >= 1024
    weight_bufs = 1 if single_w else 2
    vmem_cap = (48 << 20) if is_v7x else (100 << 20)

    # ----- batch tiling (pad ragged batches up to a tile multiple) -----------
    if block_batch is not None:
        tb = int(block_batch)
        assert tb > 0 and tb % SUBLANE == 0, \
            "block_batch must be a positive multiple of 8"
    else:
        tb = _choose_block_batch(batch)
        while tb > SUBLANE and _stage2_vmem_bytes(
                tb, in_p, h_p, out_p, recompute, weight_bufs) > (7 * vmem_cap) // 10:
            tb //= 2
    padded_batch = _round_up(max(batch, 1), tb)
    n_tiles = padded_batch // tb

    need = _stage2_vmem_bytes(tb, in_p, h_p, out_p, recompute, weight_bufs)
    vmem_limit = None
    if need > (12 << 20):            # only raise the limit when actually needed
        vmem_limit = int(min(vmem_cap, max(2 * need, 32 << 20)))

    f32, bf16 = jnp.float32, jnp.bfloat16

    def pad2(a, rows, cols):
        return jnp.pad(a, ((0, rows - a.shape[0]), (0, cols - a.shape[1])))

    # Lane-dense, bf16 matmul operands (padding is zero -> inert channels/rows).
    x_p = pad2(x, padded_batch, in_p).astype(bf16)
    w1 = pad2(params["w1"], in_p, h_p).astype(bf16)
    b1 = pad2(params["b1"], 1, h_p).astype(f32)
    gamma = pad2(params["gamma"], 1, h_p).astype(f32)
    beta = pad2(params["beta"], 1, h_p).astype(f32)
    w2 = pad2(params["w2"], h_p, h_p).astype(bf16)
    b2 = pad2(params["b2"], 1, h_p).astype(f32)
    w3 = pad2(params["w3"], h_p, out_p).astype(bf16)
    wr = pad2(params["wr"], in_p, out_p).astype(bf16)
    bcat = (pad2(params["b3"], 1, out_p) + pad2(params["br"], 1, out_p)).astype(f32)

    x_spec = pl.BlockSpec((tb, in_p), lambda i: (i, 0))
    w1_spec = _const_spec((in_p, h_p), single_w)
    stats_spec = pl.BlockSpec((1, 2, h_p), lambda i: (i, 0, 0))
    stats_shape = jax.ShapeDtypeStruct((n_tiles, 2, h_p), f32)
    cparams = pltpu.CompilerParams(dimension_semantics=("parallel",),
                                   vmem_limit_bytes=vmem_limit)

    # ---------------- stage 1: per-tile BN statistics (megacore-parallel) ----
    if materialize_h1:
        h1_bf16, stats = pl.pallas_call(
            _stage1_h1_kernel,
            grid=(n_tiles,),
            in_specs=[x_spec, w1_spec, _const_spec((1, h_p), single_w)],
            out_specs=[pl.BlockSpec((tb, h_p), lambda i: (i, 0)), stats_spec],
            out_shape=[jax.ShapeDtypeStruct((padded_batch, h_p), bf16),
                       stats_shape],
            compiler_params=cparams,
        )(x_p, w1, b1)
    else:
        (stats,) = pl.pallas_call(
            _stage1_stats_kernel,
            grid=(n_tiles,),
            in_specs=[x_spec, w1_spec],
            out_specs=[stats_spec],
            out_shape=[stats_shape],
            compiler_params=cparams,
        )(x_p, w1)

    # ---- reduce per-tile stats + fold BN into one scale/shift row (host) ----
    # stats were accumulated on d = x@W1, so padded rows contribute exactly 0
    # and no ragged-batch correction is needed; divide by the REAL batch size.
    s = jnp.sum(stats[:, 0, :], axis=0, keepdims=True)          # (1, Hp)
    ss = jnp.sum(stats[:, 1, :], axis=0, keepdims=True)         # (1, Hp)
    dmean = s / batch                                            # mean of d
    var = jnp.maximum(ss / batch - dmean * dmean, 0.0)           # biased var
    scale = gamma * lax.rsqrt(var + BN_EPS)
    if recompute:
        shift = beta - dmean * scale          # b1 folded into the BN shift
    else:
        shift = beta - (dmean + b1) * scale   # h1 already contains b1
    rows = jnp.concatenate([scale, shift, b2], axis=0)           # (3, Hp)

    # ---------------- stage 2: rest of the block (batch-parallel) ------------
    stage2 = functools.partial(_stage2_kernel, recompute)
    common_specs = [
        _const_spec((3, h_p), single_w),
        _const_spec((h_p, h_p), single_w),
        _const_spec((h_p, out_p), single_w),
        _const_spec((in_p, out_p), single_w),
        _const_spec((1, out_p), single_w),
    ]
    if recompute:
        in_specs = [x_spec, w1_spec] + common_specs
        operands = (x_p, w1, rows, w2, w3, wr, bcat)
    else:
        in_specs = [pl.BlockSpec((tb, h_p), lambda i: (i, 0)), x_spec] + common_specs
        operands = (h1_bf16, x_p, rows, w2, w3, wr, bcat)

    out_padded = pl.pallas_call(
        stage2,
        grid=(n_tiles,),
        in_specs=in_specs,
        out_specs=pl.BlockSpec((tb, out_p), lambda i: (i, 0)),
        out_shape=jax.ShapeDtypeStruct((padded_batch, out_p), f32),
        compiler_params=cparams,
    )(*operands)

    return out_padded[:batch, :out_size].astype(x.dtype)


# --------------------------------------------------------------------------
# Params / reference
# --------------------------------------------------------------------------
def init_params(key, input_size, hidden_size, output_size):
    """Deterministic synthetic init. Linear weights stored as (in, out)."""
    ks = jax.random.split(key, 8)

    def u(k, shape, scale):
        return jax.random.uniform(k, shape, jnp.float32, -scale, scale)

    return {
        "w1": u(ks[0], (input_size, hidden_size), 1.0 / jnp.sqrt(input_size)),
        "b1": u(ks[1], (1, hidden_size), 1.0 / jnp.sqrt(input_size)),
        "gamma": jnp.ones((1, hidden_size), jnp.float32),
        "beta": jnp.zeros((1, hidden_size), jnp.float32),
        "w2": u(ks[2], (hidden_size, hidden_size), 1.0 / jnp.sqrt(hidden_size)),
        "b2": u(ks[3], (1, hidden_size), 1.0 / jnp.sqrt(hidden_size)),
        "w3": u(ks[4], (hidden_size, output_size), 1.0 / jnp.sqrt(hidden_size)),
        "b3": u(ks[5], (1, output_size), 1.0 / jnp.sqrt(hidden_size)),
        "wr": u(ks[6], (input_size, output_size), 1.0 / jnp.sqrt(input_size)),
        "br": u(ks[7], (1, output_size), 1.0 / jnp.sqrt(input_size)),
    }


def residual_block_ref(x, p):
    """Pure-JAX f32 reference (training-mode BatchNorm)."""
    h = x @ p["w1"] + p["b1"]
    mean = jnp.mean(h, axis=0, keepdims=True)
    var = jnp.mean((h - mean) ** 2, axis=0, keepdims=True)
    h = (h - mean) / jnp.sqrt(var + BN_EPS) * p["gamma"] + p["beta"]
    h = jnp.where(h > 0, h, NEG_SLOPE * h)
    h = h @ p["w2"] + p["b2"]
    h = jnp.where(h > 0, h, NEG_SLOPE * h)
    h = h @ p["w3"] + p["b3"]
    return h + (x @ p["wr"] + p["br"])


if __name__ == "__main__":
    batch, input_size, hidden_size, output_size = 16, 16, 32, 16

    key = jax.random.PRNGKey(0)
    kx, kp, kx2 = jax.random.split(key, 3)
    x = jax.random.normal(kx, (batch, input_size), jnp.float32)
    params = init_params(kp, input_size, hidden_size, output_size)
    ref = residual_block_ref(x, params)

    # bf16 MXU inputs (+ bf16 h1 store on the materialized path) -> ~1e-2 error.
    TOL = dict(atol=6e-2, rtol=6e-2)

    # 1) recompute-h1 path (default on v6e/v7x); block_batch=8 -> 2 grid tiles,
    #    exercising the cross-tile BN statistics reduction.
    out = jax.block_until_ready(
        residual_block_forward(x, params, block_batch=8, materialize_h1=False))
    assert out.shape == (batch, output_size)
    assert jnp.allclose(out, ref, **TOL), (
        f"recompute path mismatch, max abs err="
        f"{float(jnp.max(jnp.abs(out - ref)))}")

    # 2) materialized bf16-h1 path (default on v5e).
    out = jax.block_until_ready(
        residual_block_forward(x, params, block_batch=8, materialize_h1=True))
    assert jnp.allclose(out, ref, **TOL), (
        f"materialized path mismatch, max abs err="
        f"{float(jnp.max(jnp.abs(out - ref)))}")

    # 3) ragged batch: padded rows must not perturb the BN statistics.
    x2 = jax.random.normal(kx2, (13, input_size), jnp.float32)
    ref2 = residual_block_ref(x2, params)
    out2 = jax.block_until_ready(residual_block_forward(x2, params))
    assert out2.shape == (13, output_size)
    assert jnp.allclose(out2, ref2, **TOL), (
        f"ragged-batch mismatch, max abs err="
        f"{float(jnp.max(jnp.abs(out2 - ref2)))}")

    print("KERNEL_OK")
</pallas_src>

<mosaic_0001>
module attributes {stable_mosaic.version = 11 : i64} {
  func.func @_stage1_stats_kernel(%arg0: i32, %arg1: memref<8x128xbf16, #tpu.memory_space<vmem>>, %arg2: memref<128x128xbf16, #tpu.memory_space<vmem>>, %arg3: memref<1x2x128xf32, #tpu.memory_space<vmem>>) attributes {dimension_semantics = [#tpu.dimension_semantics<parallel>], iteration_bounds = array<i64: 2>, scalar_prefetch = 0 : i64, scratch_operands = 0 : i64, tpu.core_type = #tpu.core_type<tc>, window_params = [{transform_indices = @transform_0, window_bounds = array<i64: 8, 128>}, {pipeline_mode = #tpu.pipeline_mode<synchronous>, transform_indices = @transform_1, window_bounds = array<i64: 128, 128>}, {transform_indices = @transform_2, window_bounds = array<i64: 1, 2, 128>}]} {
    %c0 = arith.constant 0 : index
    %c0_0 = arith.constant 0 : index
    %0 = vector.load %arg1[%c0, %c0_0] : memref<8x128xbf16, #tpu.memory_space<vmem>>, vector<8x128xbf16>
    %c0_1 = arith.constant 0 : index
    %c0_2 = arith.constant 0 : index
    %1 = vector.load %arg2[%c0_1, %c0_2] : memref<128x128xbf16, #tpu.memory_space<vmem>>, vector<128x128xbf16>
    %cst = arith.constant dense<0.000000e+00> : vector<8x128xf32>
    %2 = tpu.matmul %0, %1, %cst {dimension_numbers = #tpu.dot_dimension_numbers<[1], [0], [0], [1], [0, 0, 1, 1], [], []>} : vector<8x128xbf16>, vector<128x128xbf16>, vector<8x128xf32> -> vector<8x128xf32>
    %cst_3 = arith.constant dense<0.000000e+00> : vector<128xf32>
    %3 = vector.multi_reduction <add>, %2, %cst_3 [0] : vector<8x128xf32> to vector<128xf32>
    %4 = vector.shape_cast %3 : vector<128xf32> to vector<1x128xf32>
    %c0_4 = arith.constant 0 : index
    %c0_5 = arith.constant 0 : index
    %c0_6 = arith.constant 0 : index
    %5 = vector.load %arg3[%c0_4, %c0_5, %c0_6] : memref<1x2x128xf32, #tpu.memory_space<vmem>>, vector<1x1x128xf32>
    %6 = vector.shape_cast %5 : vector<1x1x128xf32> to vector<1x128xf32>
    %7 = vector.shape_cast %4 : vector<1x128xf32> to vector<1x1x128xf32>
    tpu.vector_store %arg3[%c0_4, %c0_5, %c0_6], %7 {strides = array<i32>} : memref<1x2x128xf32, #tpu.memory_space<vmem>>, vector<1x1x128xf32>,
    %8 = arith.mulf %2, %2 : vector<8x128xf32>
    %cst_7 = arith.constant dense<0.000000e+00> : vector<128xf32>
    %9 = vector.multi_reduction <add>, %8, %cst_7 [0] : vector<8x128xf32> to vector<128xf32>
    %10 = vector.shape_cast %9 : vector<128xf32> to vector<1x128xf32>
    %c0_8 = arith.constant 0 : index
    %c1 = arith.constant 1 : index
    %c0_9 = arith.constant 0 : index
    %11 = vector.load %arg3[%c0_8, %c1, %c0_9] : memref<1x2x128xf32, #tpu.memory_space<vmem>>, vector<1x1x128xf32>
    %12 = vector.shape_cast %11 : vector<1x1x128xf32> to vector<1x128xf32>
    %13 = vector.shape_cast %10 : vector<1x128xf32> to vector<1x1x128xf32>
    tpu.vector_store %arg3[%c0_8, %c1, %c0_9], %13 {strides = array<i32>} : memref<1x2x128xf32, #tpu.memory_space<vmem>>, vector<1x1x128xf32>,
    return
  }
  func.func @transform_0(%arg0: i32) -> (i32, i32) {
    %c0_i32 = arith.constant 0 : i32
    %c0_i32_0 = arith.constant 0 : i32
    return %arg0, %c0_i32 : i32, i32
  }
  func.func @transform_1(%arg0: i32) -> (i32, i32) {
    %c0_i32 = arith.constant 0 : i32
    %c0_i32_0 = arith.constant 0 : i32
    %c0_i32_1 = arith.constant 0 : i32
    return %c0_i32, %c0_i32_0 : i32, i32
  }
  func.func @transform_2(%arg0: i32) -> (i32, i32, i32) {
    %c0_i32 = arith.constant 0 : i32
    %c0_i32_0 = arith.constant 0 : i32
    %c0_i32_1 = arith.constant 0 : i32
    return %arg0, %c0_i32, %c0_i32_0 : i32, i32, i32
  }
}

module attributes {stable_mosaic.version = 11 : i64} {
  func.func @_stage2_kernel(%arg0: i32, %arg1: memref<8x128xbf16, #tpu.memory_space<vmem>>, %arg2: memref<128x128xbf16, #tpu.memory_space<vmem>>, %arg3: memref<3x128xf32, #tpu.memory_space<vmem>>, %arg4: memref<128x128xbf16, #tpu.memory_space<vmem>>, %arg5: memref<128x128xbf16, #tpu.memory_space<vmem>>, %arg6: memref<128x128xbf16, #tpu.memory_space<vmem>>, %arg7: memref<1x128xf32, #tpu.memory_space<vmem>>, %arg8: memref<8x128xf32, #tpu.memory_space<vmem>>) attributes {dimension_semantics = [#tpu.dimension_semantics<parallel>], iteration_bounds = array<i64: 2>, scalar_prefetch = 0 : i64, scratch_operands = 0 : i64, tpu.core_type = #tpu.core_type<tc>, window_params = [{transform_indices = @transform_0, window_bounds = array<i64: 8, 128>}, {pipeline_mode = #tpu.pipeline_mode<synchronous>, transform_indices = @transform_1, window_bounds = array<i64: 128, 128>}, {pipeline_mode = #tpu.pipeline_mode<synchronous>, transform_indices = @transform_2, window_bounds = array<i64: 3, 128>}, {pipeline_mode = #tpu.pipeline_mode<synchronous>, transform_indices = @transform_3, window_bounds = array<i64: 128, 128>}, {pipeline_mode = #tpu.pipeline_mode<synchronous>, transform_indices = @transform_4, window_bounds = array<i64: 128, 128>}, {pipeline_mode = #tpu.pipeline_mode<synchronous>, transform_indices = @transform_5, window_bounds = array<i64: 128, 128>}, {pipeline_mode = #tpu.pipeline_mode<synchronous>, transform_indices = @transform_6, window_bounds = array<i64: 1, 128>}, {transform_indices = @transform_7, window_bounds = array<i64: 8, 128>}]} {
    %c0 = arith.constant 0 : index
    %c0_0 = arith.constant 0 : index
    %0 = vector.load %arg1[%c0, %c0_0] : memref<8x128xbf16, #tpu.memory_space<vmem>>, vector<8x128xbf16>
    %c0_1 = arith.constant 0 : index
    %c0_2 = arith.constant 0 : index
    %1 = vector.load %arg2[%c0_1, %c0_2] : memref<128x128xbf16, #tpu.memory_space<vmem>>, vector<128x128xbf16>
    %cst = arith.constant dense<0.000000e+00> : vector<8x128xf32>
    %2 = tpu.matmul %0, %1, %cst {dimension_numbers = #tpu.dot_dimension_numbers<[1], [0], [0], [1], [0, 0, 1, 1], [], []>} : vector<8x128xbf16>, vector<128x128xbf16>, vector<8x128xf32> -> vector<8x128xf32>
    %c0_3 = arith.constant 0 : index
    %c0_4 = arith.constant 0 : index
    %3 = vector.load %arg3[%c0_3, %c0_4] : memref<3x128xf32, #tpu.memory_space<vmem>>, vector<1x128xf32>
    %c1 = arith.constant 1 : index
    %c0_5 = arith.constant 0 : index
    %4 = vector.load %arg3[%c1, %c0_5] : memref<3x128xf32, #tpu.memory_space<vmem>>, vector<1x128xf32>
    %c2 = arith.constant 2 : index
    %c0_6 = arith.constant 0 : index
    %5 = vector.load %arg3[%c2, %c0_6] : memref<3x128xf32, #tpu.memory_space<vmem>>, vector<1x128xf32>
    %6 = vector.broadcast %3 : vector<1x128xf32> to vector<8x128xf32>
    %7 = arith.mulf %2, %6 : vector<8x128xf32>
    %8 = vector.broadcast %4 : vector<1x128xf32> to vector<8x128xf32>
    %9 = arith.addf %7, %8 : vector<8x128xf32>
    %cst_7 = arith.constant 1.000000e-01 : f32
    %10 = vector.broadcast %cst_7 : f32 to vector<8x128xf32>
    %11 = arith.mulf %10, %9 : vector<8x128xf32>
    %12 = arith.maximumf %9, %11 : vector<8x128xf32>
    %13 = arith.truncf %12 : vector<8x128xf32> to vector<8x128xbf16>
    %c0_8 = arith.constant 0 : index
    %c0_9 = arith.constant 0 : index
    %14 = vector.load %arg4[%c0_8, %c0_9] : memref<128x128xbf16, #tpu.memory_space<vmem>>, vector<128x128xbf16>
    %cst_10 = arith.constant dense<0.000000e+00> : vector<8x128xf32>
    %15 = tpu.matmul %13, %14, %cst_10 {dimension_numbers = #tpu.dot_dimension_numbers<[1], [0], [0], [1], [0, 0, 1, 1], [], []>} : vector<8x128xbf16>, vector<128x128xbf16>, vector<8x128xf32> -> vector<8x128xf32>
    %16 = vector.broadcast %5 : vector<1x128xf32> to vector<8x128xf32>
    %17 = arith.addf %15, %16 : vector<8x128xf32>
    %cst_11 = arith.constant 1.000000e-01 : f32
    %18 = vector.broadcast %cst_11 : f32 to vector<8x128xf32>
    %19 = arith.mulf %18, %17 : vector<8x128xf32>
    %20 = arith.maximumf %17, %19 : vector<8x128xf32>
    %21 = arith.truncf %20 : vector<8x128xf32> to vector<8x128xbf16>
    %c0_12 = arith.constant 0 : index
    %c0_13 = arith.constant 0 : index
    %22 = vector.load %arg5[%c0_12, %c0_13] : memref<128x128xbf16, #tpu.memory_space<vmem>>, vector<128x128xbf16>
    %cst_14 = arith.constant dense<0.000000e+00> : vector<8x128xf32>
    %23 = tpu.matmul %21, %22, %cst_14 {dimension_numbers = #tpu.dot_dimension_numbers<[1], [0], [0], [1], [0, 0, 1, 1], [], []>} : vector<8x128xbf16>, vector<128x128xbf16>, vector<8x128xf32> -> vector<8x128xf32>
    %c0_15 = arith.constant 0 : index
    %c0_16 = arith.constant 0 : index
    %24 = vector.load %arg1[%c0_15, %c0_16] : memref<8x128xbf16, #tpu.memory_space<vmem>>, vector<8x128xbf16>
    %c0_17 = arith.constant 0 : index
    %c0_18 = arith.constant 0 : index
    %25 = vector.load %arg6[%c0_17, %c0_18] : memref<128x128xbf16, #tpu.memory_space<vmem>>, vector<128x128xbf16>
    %cst_19 = arith.constant dense<0.000000e+00> : vector<8x128xf32>
    %26 = tpu.matmul %24, %25, %cst_19 {dimension_numbers = #tpu.dot_dimension_numbers<[1], [0], [0], [1], [0, 0, 1, 1], [], []>} : vector<8x128xbf16>, vector<128x128xbf16>, vector<8x128xf32> -> vector<8x128xf32>
    %27 = arith.addf %23, %26 : vector<8x128xf32>
    %c0_20 = arith.constant 0 : index
    %c0_21 = arith.constant 0 : index
    %28 = vector.load %arg7[%c0_20, %c0_21] : memref<1x128xf32, #tpu.memory_space<vmem>>, vector<1x128xf32>
    %29 = vector.broadcast %28 : vector<1x128xf32> to vector<8x128xf32>
    %30 = arith.addf %27, %29 : vector<8x128xf32>
    %c0_22 = arith.constant 0 : index
    %c0_23 = arith.constant 0 : index
    %31 = vector.load %arg8[%c0_22, %c0_23] : memref<8x128xf32, #tpu.memory_space<vmem>>, vector<8x128xf32>
    tpu.vector_store %arg8[%c0_22, %c0_23], %30 {strides = array<i32>} : memref<8x128xf32, #tpu.memory_space<vmem>>, vector<8x128xf32>,
    return
  }
  func.func @transform_0(%arg0: i32) -> (i32, i32) {
    %c0_i32 = arith.constant 0 : i32
    %c0_i32_0 = arith.constant 0 : i32
    return %arg0, %c0_i32 : i32, i32
  }
  func.func @transform_1(%arg0: i32) -> (i32, i32) {
    %c0_i32 = arith.constant 0 : i32
    %c0_i32_0 = arith.constant 0 : i32
    %c0_i32_1 = arith.constant 0 : i32
    return %c0_i32, %c0_i32_0 : i32, i32
  }
  func.func @transform_2(%arg0: i32) -> (i32, i32) {
    %c0_i32 = arith.constant 0 : i32
    %c0_i32_0 = arith.constant 0 : i32
    %c0_i32_1 = arith.constant 0 : i32
    return %c0_i32, %c0_i32_0 : i32, i32
  }
  func.func @transform_3(%arg0: i32) -> (i32, i32) {
    %c0_i32 = arith.constant 0 : i32
    %c0_i32_0 = arith.constant 0 : i32
    %c0_i32_1 = arith.constant 0 : i32
    return %c0_i32, %c0_i32_0 : i32, i32
  }
  func.func @transform_4(%arg0: i32) -> (i32, i32) {
    %c0_i32 = arith.constant 0 : i32
    %c0_i32_0 = arith.constant 0 : i32
    %c0_i32_1 = arith.constant 0 : i32
    return %c0_i32, %c0_i32_0 : i32, i32
  }
  func.func @transform_5(%arg0: i32) -> (i32, i32) {
    %c0_i32 = arith.constant 0 : i32
    %c0_i32_0 = arith.constant 0 : i32
    %c0_i32_1 = arith.constant 0 : i32
    return %c0_i32, %c0_i32_0 : i32, i32
  }
  func.func @transform_6(%arg0: i32) -> (i32, i32) {
    %c0_i32 = arith.constant 0 : i32
    %c0_i32_0 = arith.constant 0 : i32
    %c0_i32_1 = arith.constant 0 : i32
    return %c0_i32, %c0_i32_0 : i32, i32
  }
  func.func @transform_7(%arg0: i32) -> (i32, i32) {
    %c0_i32 = arith.constant 0 : i32
    %c0_i32_0 = arith.constant 0 : i32
    return %arg0, %c0_i32 : i32, i32
  }
}

</mosaic_0001>

<llo_original>
// kernel: residual_block_forward.2
$region0: #{residual_block_forward.2}
  #allocation0 [shape = 'u32[]', space=smem, size = 0x4, offset = 0x4, fixed_abs, tag = 'smem constant byte address 0x4 - core index']
  #allocation1 [shape = 'u32[144,128]{1,0:T(1,128)}', space=vmem, size = 0x12000, scoped, tag = 'internal scratch']
  %s0 = inlined_call_operand.vmem [shape: bf16[16,128], index: 0, kind: input, shape index: {}]
  %s1 = inlined_call_operand.vmem [shape: bf16[128,128], index: 1, kind: input, shape index: {}]
  %s2 = inlined_call_operand.vmem [shape: f32[2,2,128], index: 2, kind: output, shape index: {}]
  %s3 = sld [smem:[#allocation0]]
  $region41: #{residual_block_forward.2} parent=0
    _
  %s5 = ssub.s32 1, %s3
  %s6 = scalar_select 0, %s5, %s3
  loop: start=0, step=1, limit=4
  $region2: #{residual_block_forward.2} parent=0 // loop_pre_header
    _
  $region3: #{residual_block_forward.2} parent=0 // loop_header
    %s8 = sphi 0, %s12
    %p9 = scmp.ge.s32.totalorder %s8, 4
    %s18 = sphi 0, %s20
    %s21 = sphi 0, %s18
    %s22 = sphi 0, %s21
    %s38 = sphi 0, %s22
    %s42 = sphi 0, %s42
    %s44 = sphi 0, %s42
    %s45 = sphi 0, %s44
    %s59 = sphi 0, %s45
    %s65 = sphi 0, %s67
    %s68 = sphi 0, %s65
    %s69 = sphi 0, %s68
    %s85 = sphi 0, %s69
  $region4: #{residual_block_forward.2} parent=0 // loop_header_branch
    %11 = sbr.rel (%p9) target = $region8
  $region5: #{residual_block_forward.2} parent=0 // loop_body
    %s13 = ssub.s32 %s8, 1
    %s14 = ssub.s32 %s8, 2
    %s15 = sadd.s32 %s8, 1
    %s16 = ssub.s32 %s8, %s15
    %p17 = scmp.eq.s32.totalorder %s16, 0
    %s19 = sadd.s32 %s18, 1
    %s20 = scalar_select %p17, %s18, %s19
    %p23 = pneg %p17
    %p24 = scmp.eq.s32.totalorder %s8, 1
    %p25 = por %p23, %p24
    %p26 = scmp.ne.s32.totalorder %s18, %s21
    %p27 = scmp.eq.s32.totalorder %s8, 0
    %p28 = por %p26, %p27
    %p29 = scmp.ne.s32.totalorder %s18, %s21
    %p30 = scmp.eq.s32.totalorder %s13, 1
    %p31 = por %p29, %p30
    %p32 = scmp.ne.s32.totalorder %s21, %s22
    %p33 = scmp.eq.s32.totalorder %s13, 0
    %p34 = por %p32, %p33
    %p35 = scmp.ne.s32.totalorder %s21, %s22
    %p36 = scmp.eq.s32.totalorder %s14, 1
    %p37 = por %p35, %p36
    %p39 = scmp.ne.s32.totalorder %s22, %s38
    %p40 = scmp.eq.s32.totalorder %s14, 0
    %p41 = por %p39, %p40
    %s43 = sadd.s32 %s42, 1
    %p46 = scmp.eq.s32.totalorder %s8, 1
    %p47 = scmp.ne.s32.totalorder %s42, %s44
    %p48 = scmp.eq.s32.totalorder %s8, 0
    %p49 = por %p47, %p48
    %p50 = scmp.ne.s32.totalorder %s42, %s44
    %p51 = scmp.eq.s32.totalorder %s13, 1
    %p52 = por %p50, %p51
    %p53 = scmp.ne.s32.totalorder %s44, %s45
    %p54 = scmp.eq.s32.totalorder %s13, 0
    %p55 = por %p53, %p54
    %p56 = scmp.ne.s32.totalorder %s44, %s45
    %p57 = scmp.eq.s32.totalorder %s14, 1
    %p58 = por %p56, %p57
    %p60 = scmp.ne.s32.totalorder %s45, %s59
    %p61 = scmp.eq.s32.totalorder %s14, 0
    %p62 = por %p60, %p61
    %s63 = ssub.s32 %s8, %s15
    %p64 = scmp.eq.s32.totalorder %s63, 0
    %s66 = sadd.s32 %s65, 1
    %s67 = scalar_select %p64, %s65, %s66
    %p70 = pneg %p64
    %p71 = scmp.eq.s32.totalorder %s8, 1
    %p72 = por %p70, %p71
    %p73 = scmp.ne.s32.totalorder %s65, %s68
    %p74 = scmp.eq.s32.totalorder %s8, 0
    %p75 = por %p73, %p74
    %p76 = scmp.ne.s32.totalorder %s65, %s68
    %p77 = scmp.eq.s32.totalorder %s13, 1
    %p78 = por %p76, %p77
    %p79 = scmp.ne.s32.totalorder %s68, %s69
    %p80 = scmp.eq.s32.totalorder %s13, 0
    %p81 = por %p79, %p80
    %p82 = scmp.ne.s32.totalorder %s68, %s69
    %p83 = scmp.eq.s32.totalorder %s14, 1
    %p84 = por %p82, %p83
    %p86 = scmp.ne.s32.totalorder %s69, %s85
    %p87 = scmp.eq.s32.totalorder %s14, 0
    %p88 = por %p86, %p87
    %p89 = scmp.le.s32.totalorder 1, %s8
    %p90 = scmp.lt.s32.totalorder %s8, 3
    %p91 = pnand %p89, %p90
    %p92 = pneg %p91
    // Predicated region
    $region9: #{residual_block_forward.2} parent=5 // pred_check
      _
    $region10: #{residual_block_forward.2} parent=5 // pred_check_branch
      %94 = sbr.rel (%p91) target = $region12
    $region11: #{residual_block_forward.2} parent=5 // pred_region
      %s95 = ssub.s32 %s8, 1
      // Predicated region
      $region13: #{residual_block_forward.2} parent=11 // pred_check
        %p96 = pneg %p55
      $region14: #{residual_block_forward.2} parent=11 // pred_check_branch
        %98 = sbr.rel (%p96) target = $region16
      $region15: #{residual_block_forward.2} parent=11 // pred_region
        _
      $region16: #{residual_block_forward.2} parent=11 // pred_fallthru
        _
    $region12: #{residual_block_forward.2} parent=5 // pred_fallthru
      _
    %p99 = scmp.lt.s32.totalorder %s8, 2
    // Predicated region
    $region17: #{residual_block_forward.2} parent=5 // pred_check
      %p100 = pneg %p99
    $region18: #{residual_block_forward.2} parent=5 // pred_check_branch
      %102 = sbr.rel (%p100) target = $region20
    $region19: #{residual_block_forward.2} parent=5 // pred_region
      // Predicated region
      $region21: #{residual_block_forward.2} parent=19 // pred_check
        %p103 = pneg %p28
      $region22: #{residual_block_forward.2} parent=19 // pred_check_branch
        %105 = sbr.rel (%p103) target = $region24
      $region23: #{residual_block_forward.2} parent=19 // pred_region
        %p106 = scmp.lt.s32.totalorder %s8, 1
        %s107 = scalar_select %p106, %s8, 1
        %s108 = smul.addr %s107, 4
        %s109 = scalar_lea.vmem %s0, %s108
      $region24: #{residual_block_forward.2} parent=19 // pred_fallthru
        _
    $region20: #{residual_block_forward.2} parent=5 // pred_fallthru
      _
    %p110 = scmp.le.s32.totalorder 1, %s8
    %p111 = scmp.lt.s32.totalorder %s8, 3
    %p112 = pnand %p110, %p111
    %p113 = pneg %p112
    // Predicated region
    $region25: #{residual_block_forward.2} parent=5 // pred_check
      _
    $region26: #{residual_block_forward.2} parent=5 // pred_check_branch
      %115 = sbr.rel (%p112) target = $region28
    $region27: #{residual_block_forward.2} parent=5 // pred_region
      %s116 = ssub.s32 %s8, 1
      %p117 = scmp.lt.s32.totalorder %s13, 1
      %s118 = scalar_select %p117, %s13, 1
      %s119 = smul.addr %s118, 4
      %s120 = scalar_lea.vmem %s0, %s119
      %p121 = pneg %p34
      %p122 = pneg %p31
      %p123 = pneg %p55
      %p124 = pneg %p52
      %p125 = pneg %p81
      %p126 = pneg %p78
      %p127 = scmp.lt.s32.totalorder %s13, 1
      %s128 = scalar_select %p127, %s13, 1
      %s129 = smul.addr %s128, 2
      %s130 = scalar_lea.vmem %s2, %s129
      %p131 = scmp.lt.s32.totalorder %s13, 1
      %s132 = scalar_select %p131, %s13, 1
      %s133 = smul.addr %s132, 4
      %s134 = scalar_lea.vmem %s0, %s133
      %p135 = scmp.lt.s32.totalorder %s13, 1
      %s136 = scalar_select %p135, %s13, 1
      %s137 = smul.addr %s136, 2
      %s138 = scalar_lea.vmem %s2, %s137
      %v140 = vld [vmem:[%s134] sm:$0xf]
      %v141 = vld [vmem:[%s1] sm:$0xf]
      %v142 = vld [vmem:[%s1 + $0x4] sm:$0xf]
      %v143 = vld [vmem:[%s1 + $0x8] sm:$0xf]
      %v144 = vld [vmem:[%s1 + $0xc] sm:$0xf]
      %v145 = vld [vmem:[%s1 + $0x10] sm:$0xf]
      %v146 = vld [vmem:[%s1 + $0x14] sm:$0xf]
      %v147 = vld [vmem:[%s1 + $0x18] sm:$0xf]
      %v148 = vld [vmem:[%s1 + $0x1c] sm:$0xf]
      %v149 = vld [vmem:[%s1 + $0x20] sm:$0xf]
      %v150 = vld [vmem:[%s1 + $0x24] sm:$0xf]
      %v151 = vld [vmem:[%s1 + $0x28] sm:$0xf]
      %v152 = vld [vmem:[%s1 + $0x2c] sm:$0xf]
      %v153 = vld [vmem:[%s1 + $0x30] sm:$0xf]
      %v154 = vld [vmem:[%s1 + $0x34] sm:$0xf]
      %v155 = vld [vmem:[%s1 + $0x38] sm:$0xf]
      %v156 = vld [vmem:[%s1 + $0x3c] sm:$0xf]
      %v173 = vunpack.c.l.b16 %v141
      %v174 = vunpack.c.l.b16 %v142
      %v175 = vunpack.c.l.b16 %v143
      %v176 = vunpack.c.l.b16 %v144
      %v177 = vunpack.c.l.b16 %v145
      %v178 = vunpack.c.l.b16 %v146
      %v179 = vunpack.c.l.b16 %v147
      %v180 = vunpack.c.l.b16 %v148
      %v181 = vunpack.c.l.b16 %v149
      %v182 = vunpack.c.l.b16 %v150
      %v183 = vunpack.c.l.b16 %v151
      %v184 = vunpack.c.l.b16 %v152
      %v185 = vunpack.c.l.b16 %v153
      %v186 = vunpack.c.l.b16 %v154
      %v187 = vunpack.c.l.b16 %v155
      %v188 = vunpack.c.l.b16 %v156
      %v189 = vpack.c.b16 %v174, %v173
      %v190 = vpack.c.b16 %v176, %v175
      %v191 = vpack.c.b16 %v178, %v177
      %v192 = vpack.c.b16 %v180, %v179
      %v193 = vpack.c.b16 %v182, %v181
      %v194 = vpack.c.b16 %v184, %v183
      %v195 = vpack.c.b16 %v186, %v185
      %v196 = vpack.c.b16 %v188, %v187
      %205 = vmatprep.subr.bf16.mxu0 0
      %206 = vmatpush1.bf16.msra.mxu0 %v189
      %207 = vmatprep.subr.bf16.mxu0 0
      %208 = vmatpush1.bf16.msra.mxu0 %v190
      %209 = vmatprep.subr.bf16.mxu0 0
      %210 = vmatpush1.bf16.msra.mxu0 %v191
      %211 = vmatprep.subr.bf16.mxu0 0
      %212 = vmatpush1.bf16.msra.mxu0 %v192
      %213 = vmatprep.subr.bf16.mxu0 0
      %214 = vmatpush1.bf16.msra.mxu0 %v193
      %215 = vmatprep.subr.bf16.mxu0 0
      %216 = vmatpush1.bf16.msra.mxu0 %v194
      %217 = vmatprep.subr.bf16.mxu0 0
      %218 = vmatpush1.bf16.msra.mxu0 %v195
      %219 = vmatprep.subr.bf16.mxu0 0
      %220 = vmatpush1.bf16.msra.mxu0 %v196
      %221 = vmatprep.subr.bf16.mxu0 0
      %222 = vmatpush1.bf16.msra.mxu0 0
      %223 = vmatprep.subr.bf16.mxu0 0
      %224 = vmatpush1.bf16.msra.mxu0 0
      %225 = vmatprep.subr.bf16.mxu0 0
      %226 = vmatpush1.bf16.msra.mxu0 0
      %227 = vmatprep.subr.bf16.mxu0 0
      %228 = vmatpush1.bf16.msra.mxu0 0
      %229 = vmatprep.subr.bf16.mxu0 0
      %230 = vmatpush1.bf16.msra.mxu0 0
      %231 = vmatprep.subr.bf16.mxu0 0
      %232 = vmatpush1.bf16.msra.mxu0 0
      %233 = vmatprep.subr.bf16.mxu0 0
      %234 = vmatpush1.bf16.msra.mxu0 0
      %235 = vmatprep.subr.bf16.mxu0 0
      %236 = vmatpush1.bf16.msra.mxu0 0
      %237 = vmatprep.mubr.bf16.mxu0 0
      %238 = vmatmul.mubr.bf16.gmra.mrb[0].mxu0 %v140
      %v239 = vpop.f32.mrb[0].mxu0
      %v240 = vadd.f32 0.0, %v239
      %v241 = vpop.f32.mrb[0].mxu0
      %v242 = vpop.f32.mrb[0].mxu0
      %v243 = vpop.f32.mrb[0].mxu0
      %244 = vdwg.mxu0
      %v245 = vrot.slane %v240, 4
      %v246 = vadd.f32 %v240, %v245
      %v247 = vrot.slane %v246, 2
      %v248 = vadd.f32 %v246, %v247
      %v249 = vrot.slane %v248, 1
      %v250 = vadd.f32 %v248, %v249
      %251 = vst [vmem:[%s138] sm:$0x1] %v250
      %v252 = vmul.f32 %v240, %v240
      %v253 = vrot.slane %v252, 4
      %v254 = vadd.f32 %v252, %v253
      %v255 = vrot.slane %v254, 2
      %v256 = vadd.f32 %v254, %v255
      %v257 = vrot.slane %v256, 1
      %v258 = vadd.f32 %v256, %v257
      %259 = vst [vmem:[%s138 + $0x1] sm:$0x1] %v258
      %p260 = scmp.lt.s32.totalorder %s13, 1
      %s261 = scalar_select %p260, %s13, 1
      %s262 = smul.addr %s261, 2
      %s263 = scalar_lea.vmem %s2, %s262
      // Predicated region
      $region29: #{residual_block_forward.2} parent=27 // pred_check
        %p264 = pneg %p78
      $region30: #{residual_block_forward.2} parent=27 // pred_check_branch
        %266 = sbr.rel (%p264) target = $region32
      $region31: #{residual_block_forward.2} parent=27 // pred_region
        _
      $region32: #{residual_block_forward.2} parent=27 // pred_fallthru
        _
    $region28: #{residual_block_forward.2} parent=5 // pred_fallthru
      _
    %p267 = scmp.le.s32.totalorder 2, %s8
    // Predicated region
    $region33: #{residual_block_forward.2} parent=5 // pred_check
      %p268 = pneg %p267
    $region34: #{residual_block_forward.2} parent=5 // pred_check_branch
      %270 = sbr.rel (%p268) target = $region36
    $region35: #{residual_block_forward.2} parent=5 // pred_region
      %s271 = ssub.s32 %s8, 2
      // Predicated region
      $region37: #{residual_block_forward.2} parent=35 // pred_check
        %p272 = pneg %p84
      $region38: #{residual_block_forward.2} parent=35 // pred_check_branch
        %274 = sbr.rel (%p272) target = $region40
      $region39: #{residual_block_forward.2} parent=35 // pred_region
        %p275 = scmp.lt.s32.totalorder %s14, 1
        %s276 = scalar_select %p275, %s14, 1
        %s277 = smul.addr %s276, 2
        %s278 = scalar_lea.vmem %s2, %s277
      $region40: #{residual_block_forward.2} parent=35 // pred_fallthru
        _
    $region36: #{residual_block_forward.2} parent=5 // pred_fallthru
      _
  $region6: #{residual_block_forward.2} parent=0 // loop_footer
    %s12 = sadd.s32 1, %s8
  $region7: #{residual_block_forward.2} parent=0 // loop_footer_branch
    %7 = sbr.rel target = $region3
  $region8: #{residual_block_forward.2} parent=0 // loop_exit
    _

// kernel: residual_block_forward.3
$region0: #{residual_block_forward.3}
  #allocation0 [shape = 'u32[]', space=smem, size = 0x4, offset = 0x4, fixed_abs, tag = 'smem constant byte address 0x4 - core index']
  #allocation1 [shape = 'u32[144,128]{1,0:T(1,128)}', space=vmem, size = 0x12000, scoped, tag = 'internal scratch']
  %s0 = inlined_call_operand.vmem [shape: bf16[16,128], index: 0, kind: input, shape index: {}]
  %s1 = inlined_call_operand.vmem [shape: bf16[128,128], index: 1, kind: input, shape index: {}]
  %s2 = inlined_call_operand.vmem [shape: f32[3,128], index: 2, kind: input, shape index: {}]
  %s3 = inlined_call_operand.vmem [shape: bf16[128,128], index: 3, kind: input, shape index: {}]
  %s4 = inlined_call_operand.vmem [shape: bf16[128,128], index: 4, kind: input, shape index: {}]
  %s5 = inlined_call_operand.vmem [shape: bf16[128,128], index: 5, kind: input, shape index: {}]
  %s6 = inlined_call_operand.vmem [shape: f32[1,128], index: 6, kind: input, shape index: {}]
  %s7 = inlined_call_operand.hbm [shape: f32[16,128], index: 7, kind: output, shape index: {}]
  %s8 = sld [smem:[#allocation0]]
  $region61: #{residual_block_forward.3} parent=0
    _
  %s10 = ssub.s32 1, %s8
  %s11 = scalar_select 0, %s10, %s8
  $region1: #{residual_block_forward.3} parent=0
    #allocation2 [shape = 'u8[8192]{0}', space=vmem, size = 0x2000, scoped, tag = 'output window, operand 0']
    #allocation3 [shape = 's32[2]{0}', space=sflag, size = 0x8, scoped, tag = 'scoped memory for residual_block_forward.3']
    %12 = vsyncpa [#allocation3], 0
    %s13 = scalar_lea.sflag [#allocation3], 1
    %14 = vsyncpa %s13, 0
    loop: start=0, step=1, limit=4
    $region2: #{residual_block_forward.3} parent=1 // loop_pre_header
      _
    $region3: #{residual_block_forward.3} parent=1 // loop_header
      %s16 = sphi 0, %s20
      %p17 = scmp.ge.s32.totalorder %s16, 4
      %s26 = sphi 0, %s28
      %s29 = sphi 0, %s26
      %s30 = sphi 0, %s29
      %s46 = sphi 0, %s30
      %s50 = sphi 0, %s50
      %s52 = sphi 0, %s50
      %s53 = sphi 0, %s52
      %s67 = sphi 0, %s53
      %s71 = sphi 0, %s71
      %s73 = sphi 0, %s71
      %s74 = sphi 0, %s73
      %s88 = sphi 0, %s74
      %s92 = sphi 0, %s92
      %s94 = sphi 0, %s92
      %s95 = sphi 0, %s94
      %s109 = sphi 0, %s95
      %s113 = sphi 0, %s113
      %s115 = sphi 0, %s113
      %s116 = sphi 0, %s115
      %s130 = sphi 0, %s116
      %s134 = sphi 0, %s134
      %s136 = sphi 0, %s134
      %s137 = sphi 0, %s136
      %s151 = sphi 0, %s137
      %s155 = sphi 0, %s155
      %s157 = sphi 0, %s155
      %s158 = sphi 0, %s157
      %s172 = sphi 0, %s158
      %s178 = sphi 0, %s180
      %s181 = sphi 0, %s178
      %s182 = sphi 0, %s181
      %s198 = sphi 0, %s182
    $region4: #{residual_block_forward.3} parent=1 // loop_header_branch
      %19 = sbr.rel (%p17) target = $region8
    $region5: #{residual_block_forward.3} parent=1 // loop_body
      %s21 = ssub.s32 %s16, 1
      %s22 = ssub.s32 %s16, 2
      %s23 = sadd.s32 %s16, 1
      %s24 = ssub.s32 %s16, %s23
      %p25 = scmp.eq.s32.totalorder %s24, 0
      %s27 = sadd.s32 %s26, 1
      %s28 = scalar_select %p25, %s26, %s27
      %p31 = pneg %p25
      %p32 = scmp.eq.s32.totalorder %s16, 1
      %p33 = por %p31, %p32
      %p34 = scmp.ne.s32.totalorder %s26, %s29
      %p35 = scmp.eq.s32.totalorder %s16, 0
      %p36 = por %p34, %p35
      %p37 = scmp.ne.s32.totalorder %s26, %s29
      %p38 = scmp.eq.s32.totalorder %s21, 1
      %p39 = por %p37, %p38
      %p40 = scmp.ne.s32.totalorder %s29, %s30
      %p41 = scmp.eq.s32.totalorder %s21, 0
      %p42 = por %p40, %p41
      %p43 = scmp.ne.s32.totalorder %s29, %s30
      %p44 = scmp.eq.s32.totalorder %s22, 1
      %p45 = por %p43, %p44
      %p47 = scmp.ne.s32.totalorder %s30, %s46
      %p48 = scmp.eq.s32.totalorder %s22, 0
      %p49 = por %p47, %p48
      %s51 = sadd.s32 %s50, 1
      %p54 = scmp.eq.s32.totalorder %s16, 1
      %p55 = scmp.ne.s32.totalorder %s50, %s52
      %p56 = scmp.eq.s32.totalorder %s16, 0
      %p57 = por %p55, %p56
      %p58 = scmp.ne.s32.totalorder %s50, %s52
      %p59 = scmp.eq.s32.totalorder %s21, 1
      %p60 = por %p58, %p59
      %p61 = scmp.ne.s32.totalorder %s52, %s53
      %p62 = scmp.eq.s32.totalorder %s21, 0
      %p63 = por %p61, %p62
      %p64 = scmp.ne.s32.totalorder %s52, %s53
      %p65 = scmp.eq.s32.totalorder %s22, 1
      %p66 = por %p64, %p65
      %p68 = scmp.ne.s32.totalorder %s53, %s67
      %p69 = scmp.eq.s32.totalorder %s22, 0
      %p70 = por %p68, %p69
      %s72 = sadd.s32 %s71, 1
      %p75 = scmp.eq.s32.totalorder %s16, 1
      %p76 = scmp.ne.s32.totalorder %s71, %s73
      %p77 = scmp.eq.s32.totalorder %s16, 0
      %p78 = por %p76, %p77
      %p79 = scmp.ne.s32.totalorder %s71, %s73
      %p80 = scmp.eq.s32.totalorder %s21, 1
      %p81 = por %p79, %p80
      %p82 = scmp.ne.s32.totalorder %s73, %s74
      %p83 = scmp.eq.s32.totalorder %s21, 0
      %p84 = por %p82, %p83
      %p85 = scmp.ne.s32.totalorder %s73, %s74
      %p86 = scmp.eq.s32.totalorder %s22, 1
      %p87 = por %p85, %p86
      %p89 = scmp.ne.s32.totalorder %s74, %s88
      %p90 = scmp.eq.s32.totalorder %s22, 0
      %p91 = por %p89, %p90
      %s93 = sadd.s32 %s92, 1
      %p96 = scmp.eq.s32.totalorder %s16, 1
      %p97 = scmp.ne.s32.totalorder %s92, %s94
      %p98 = scmp.eq.s32.totalorder %s16, 0
      %p99 = por %p97, %p98
      %p100 = scmp.ne.s32.totalorder %s92, %s94
      %p101 = scmp.eq.s32.totalorder %s21, 1
      %p102 = por %p100, %p101
      %p103 = scmp.ne.s32.totalorder %s94, %s95
      %p104 = scmp.eq.s32.totalorder %s21, 0
      %p105 = por %p103, %p104
      %p106 = scmp.ne.s32.totalorder %s94, %s95
      %p107 = scmp.eq.s32.totalorder %s22, 1
      %p108 = por %p106, %p107
      %p110 = scmp.ne.s32.totalorder %s95, %s109
      %p111 = scmp.eq.s32.totalorder %s22, 0
      %p112 = por %p110, %p111
      %s114 = sadd.s32 %s113, 1
      %p117 = scmp.eq.s32.totalorder %s16, 1
      %p118 = scmp.ne.s32.totalorder %s113, %s115
      %p119 = scmp.eq.s32.totalorder %s16, 0
      %p120 = por %p118, %p119
      %p121 = scmp.ne.s32.totalorder %s113, %s115
      %p122 = scmp.eq.s32.totalorder %s21, 1
      %p123 = por %p121, %p122
      %p124 = scmp.ne.s32.totalorder %s115, %s116
      %p125 = scmp.eq.s32.totalorder %s21, 0
      %p126 = por %p124, %p125
      %p127 = scmp.ne.s32.totalorder %s115, %s116
      %p128 = scmp.eq.s32.totalorder %s22, 1
      %p129 = por %p127, %p128
      %p131 = scmp.ne.s32.totalorder %s116, %s130
      %p132 = scmp.eq.s32.totalorder %s22, 0
      %p133 = por %p131, %p132
      %s135 = sadd.s32 %s134, 1
      %p138 = scmp.eq.s32.totalorder %s16, 1
      %p139 = scmp.ne.s32.totalorder %s134, %s136
      %p140 = scmp.eq.s32.totalorder %s16, 0
      %p141 = por %p139, %p140
      %p142 = scmp.ne.s32.totalorder %s134, %s136
      %p143 = scmp.eq.s32.totalorder %s21, 1
      %p144 = por %p142, %p143
      %p145 = scmp.ne.s32.totalorder %s136, %s137
      %p146 = scmp.eq.s32.totalorder %s21, 0
      %p147 = por %p145, %p146
      %p148 = scmp.ne.s32.totalorder %s136, %s137
      %p149 = scmp.eq.s32.totalorder %s22, 1
      %p150 = por %p148, %p149
      %p152 = scmp.ne.s32.totalorder %s137, %s151
      %p153 = scmp.eq.s32.totalorder %s22, 0
      %p154 = por %p152, %p153
      %s156 = sadd.s32 %s155, 1
      %p159 = scmp.eq.s32.totalorder %s16, 1
      %p160 = scmp.ne.s32.totalorder %s155, %s157
      %p161 = scmp.eq.s32.totalorder %s16, 0
      %p162 = por %p160, %p161
      %p163 = scmp.ne.s32.totalorder %s155, %s157
      %p164 = scmp.eq.s32.totalorder %s21, 1
      %p165 = por %p163, %p164
      %p166 = scmp.ne.s32.totalorder %s157, %s158
      %p167 = scmp.eq.s32.totalorder %s21, 0
      %p168 = por %p166, %p167
      %p169 = scmp.ne.s32.totalorder %s157, %s158
      %p170 = scmp.eq.s32.totalorder %s22, 1
      %p171 = por %p169, %p170
      %p173 = scmp.ne.s32.totalorder %s158, %s172
      %p174 = scmp.eq.s32.totalorder %s22, 0
      %p175 = por %p173, %p174
      %s176 = ssub.s32 %s16, %s23
      %p177 = scmp.eq.s32.totalorder %s176, 0
      %s179 = sadd.s32 %s178, 1
      %s180 = scalar_select %p177, %s178, %s179
      %p183 = pneg %p177
      %p184 = scmp.eq.s32.totalorder %s16, 1
      %p185 = por %p183, %p184
      %p186 = scmp.ne.s32.totalorder %s178, %s181
      %p187 = scmp.eq.s32.totalorder %s16, 0
      %p188 = por %p186, %p187
      %p189 = scmp.ne.s32.totalorder %s178, %s181
      %p190 = scmp.eq.s32.totalorder %s21, 1
      %p191 = por %p189, %p190
      %p192 = scmp.ne.s32.totalorder %s181, %s182
      %p193 = scmp.eq.s32.totalorder %s21, 0
      %p194 = por %p192, %p193
      %p195 = scmp.ne.s32.totalorder %s181, %s182
      %p196 = scmp.eq.s32.totalorder %s22, 1
      %p197 = por %p195, %p196
      %p199 = scmp.ne.s32.totalorder %s182, %s198
      %p200 = scmp.eq.s32.totalorder %s22, 0
      %p201 = por %p199, %p200
      %p202 = scmp.le.s32.totalorder 1, %s16
      %p203 = scmp.lt.s32.totalorder %s16, 3
      %p204 = pnand %p202, %p203
      %p205 = pneg %p204
      // Predicated region
      $region9: #{residual_block_forward.3} parent=5 // pred_check
        _
      $region10: #{residual_block_forward.3} parent=5 // pred_check_branch
        %207 = sbr.rel (%p204) target = $region12
      $region11: #{residual_block_forward.3} parent=5 // pred_region
        %s208 = ssub.s32 %s16, 1
        // Predicated region
        $region13: #{residual_block_forward.3} parent=11 // pred_check
          %p209 = pneg %p63
        $region14: #{residual_block_forward.3} parent=11 // pred_check_branch
          %211 = sbr.rel (%p209) target = $region16
        $region15: #{residual_block_forward.3} parent=11 // pred_region
          _
        $region16: #{residual_block_forward.3} parent=11 // pred_fallthru
          _
        // Predicated region
        $region17: #{residual_block_forward.3} parent=11 // pred_check
          %p212 = pneg %p84
        $region18: #{residual_block_forward.3} parent=11 // pred_check_branch
          %214 = sbr.rel (%p212) target = $region20
        $region19: #{residual_block_forward.3} parent=11 // pred_region
          _
        $region20: #{residual_block_forward.3} parent=11 // pred_fallthru
          _
        // Predicated region
        $region21: #{residual_block_forward.3} parent=11 // pred_check
          %p215 = pneg %p105
        $region22: #{residual_block_forward.3} parent=11 // pred_check_branch
          %217 = sbr.rel (%p215) target = $region24
        $region23: #{residual_block_forward.3} parent=11 // pred_region
          _
        $region24: #{residual_block_forward.3} parent=11 // pred_fallthru
          _
        // Predicated region
        $region25: #{residual_block_forward.3} parent=11 // pred_check
          %p218 = pneg %p126
        $region26: #{residual_block_forward.3} parent=11 // pred_check_branch
          %220 = sbr.rel (%p218) target = $region28
        $region27: #{residual_block_forward.3} parent=11 // pred_region
          _
        $region28: #{residual_block_forward.3} parent=11 // pred_fallthru
          _
        // Predicated region
        $region29: #{residual_block_forward.3} parent=11 // pred_check
          %p221 = pneg %p147
        $region30: #{residual_block_forward.3} parent=11 // pred_check_branch
          %223 = sbr.rel (%p221) target = $region32
        $region31: #{residual_block_forward.3} parent=11 // pred_region
          _
        $region32: #{residual_block_forward.3} parent=11 // pred_fallthru
          _
        // Predicated region
        $region33: #{residual_block_forward.3} parent=11 // pred_check
          %p224 = pneg %p168
        $region34: #{residual_block_forward.3} parent=11 // pred_check_branch
          %226 = sbr.rel (%p224) target = $region36
        $region35: #{residual_block_forward.3} parent=11 // pred_region
          _
        $region36: #{residual_block_forward.3} parent=11 // pred_fallthru
          _
      $region12: #{residual_block_forward.3} parent=5 // pred_fallthru
        _
      %p227 = scmp.lt.s32.totalorder %s16, 2
      // Predicated region
      $region37: #{residual_block_forward.3} parent=5 // pred_check
        %p228 = pneg %p227
      $region38: #{residual_block_forward.3} parent=5 // pred_check_branch
        %230 = sbr.rel (%p228) target = $region40
      $region39: #{residual_block_forward.3} parent=5 // pred_region
        // Predicated region
        $region41: #{residual_block_forward.3} parent=39 // pred_check
          %p231 = pneg %p36
        $region42: #{residual_block_forward.3} parent=39 // pred_check_branch
          %233 = sbr.rel (%p231) target = $region44
        $region43: #{residual_block_forward.3} parent=39 // pred_region
          %p234 = scmp.lt.s32.totalorder %s16, 1
          %s235 = scalar_select %p234, %s16, 1
          %s236 = smul.addr %s235, 4
          %s237 = scalar_lea.vmem %s0, %s236
        $region44: #{residual_block_forward.3} parent=39 // pred_fallthru
          _
      $region40: #{residual_block_forward.3} parent=5 // pred_fallthru
        _
      %p238 = scmp.le.s32.totalorder 1, %s16
      %p239 = scmp.lt.s32.totalorder %s16, 3
      %p240 = pnand %p238, %p239
      %p241 = pneg %p240
      // Predicated region
      $region45: #{residual_block_forward.3} parent=5 // pred_check
        _
      $region46: #{residual_block_forward.3} parent=5 // pred_check_branch
        %243 = sbr.rel (%p240) target = $region48
      $region47: #{residual_block_forward.3} parent=5 // pred_region
        %s244 = ssub.s32 %s16, 1
        %p245 = scmp.lt.s32.totalorder %s21, 1
        %s246 = scalar_select %p245, %s21, 1
        %s247 = smul.addr %s246, 4
        %s248 = scalar_lea.vmem %s0, %s247
        %p249 = pneg %p42
        %p250 = pneg %p39
        %p251 = pneg %p63
        %p252 = pneg %p60
        %p253 = pneg %p84
        %p254 = pneg %p81
        %p255 = pneg %p105
        %p256 = pneg %p102
        %p257 = pneg %p126
        %p258 = pneg %p123
        %p259 = pneg %p147
        %p260 = pneg %p144
        %p261 = pneg %p168
        %p262 = pneg %p165
        %p263 = pneg %p194
        %p264 = pneg %p191
        %s265 = sand.u32 %s181, 1
        %s266 = scalar_lea.sflag [#allocation3], %s265
        %s267 = sand.u32 %s181, 1
        %s268 = smul.addr %s267, 8
        %s269 = scalar_lea.vmem [#allocation2], %s268
        %p270 = scmp.lt.s32.totalorder %s21, 1
        %s271 = scalar_select %p270, %s21, 1
        %s272 = smul.addr %s271, 4
        %s273 = scalar_lea.vmem %s0, %s272
        %v275 = vld [vmem:[%s273] sm:$0xf]
        %v276 = vld [vmem:[%s1] sm:$0xf]
        %v277 = vld [vmem:[%s1 + $0x4] sm:$0xf]
        %v278 = vld [vmem:[%s1 + $0x8] sm:$0xf]
        %v279 = vld [vmem:[%s1 + $0xc] sm:$0xf]
        %v280 = vld [vmem:[%s1 + $0x10] sm:$0xf]
        %v281 = vld [vmem:[%s1 + $0x14] sm:$0xf]
        %v282 = vld [vmem:[%s1 + $0x18] sm:$0xf]
        %v283 = vld [vmem:[%s1 + $0x1c] sm:$0xf]
        %v284 = vld [vmem:[%s1 + $0x20] sm:$0xf]
        %v285 = vld [vmem:[%s1 + $0x24] sm:$0xf]
        %v286 = vld [vmem:[%s1 + $0x28] sm:$0xf]
        %v287 = vld [vmem:[%s1 + $0x2c] sm:$0xf]
        %v288 = vld [vmem:[%s1 + $0x30] sm:$0xf]
        %v289 = vld [vmem:[%s1 + $0x34] sm:$0xf]
        %v290 = vld [vmem:[%s1 + $0x38] sm:$0xf]
        %v291 = vld [vmem:[%s1 + $0x3c] sm:$0xf]
        %v308 = vunpack.c.l.b16 %v276
        %v309 = vunpack.c.l.b16 %v277
        %v310 = vunpack.c.l.b16 %v278
        %v311 = vunpack.c.l.b16 %v279
        %v312 = vunpack.c.l.b16 %v280
        %v313 = vunpack.c.l.b16 %v281
        %v314 = vunpack.c.l.b16 %v282
        %v315 = vunpack.c.l.b16 %v283
        %v316 = vunpack.c.l.b16 %v284
        %v317 = vunpack.c.l.b16 %v285
        %v318 = vunpack.c.l.b16 %v286
        %v319 = vunpack.c.l.b16 %v287
        %v320 = vunpack.c.l.b16 %v288
        %v321 = vunpack.c.l.b16 %v289
        %v322 = vunpack.c.l.b16 %v290
        %v323 = vunpack.c.l.b16 %v291
        %v324 = vpack.c.b16 %v309, %v308
        %v325 = vpack.c.b16 %v311, %v310
        %v326 = vpack.c.b16 %v313, %v312
        %v327 = vpack.c.b16 %v315, %v314
        %v328 = vpack.c.b16 %v317, %v316
        %v329 = vpack.c.b16 %v319, %v318
        %v330 = vpack.c.b16 %v321, %v320
        %v331 = vpack.c.b16 %v323, %v322
        %340 = vmatprep.subr.bf16.mxu0 0
        %341 = vmatpush1.bf16.msra.mxu0 %v324
        %342 = vmatprep.subr.bf16.mxu0 0
        %343 = vmatpush1.bf16.msra.mxu0 %v325
        %344 = vmatprep.subr.bf16.mxu0 0
        %345 = vmatpush1.bf16.msra.mxu0 %v326
        %346 = vmatprep.subr.bf16.mxu0 0
        %347 = vmatpush1.bf16.msra.mxu0 %v327
        %348 = vmatprep.subr.bf16.mxu0 0
        %349 = vmatpush1.bf16.msra.mxu0 %v328
        %350 = vmatprep.subr.bf16.mxu0 0
        %351 = vmatpush1.bf16.msra.mxu0 %v329
        %352 = vmatprep.subr.bf16.mxu0 0
        %353 = vmatpush1.bf16.msra.mxu0 %v330
        %354 = vmatprep.subr.bf16.mxu0 0
        %355 = vmatpush1.bf16.msra.mxu0 %v331
        %356 = vmatprep.subr.bf16.mxu0 0
        %357 = vmatpush1.bf16.msra.mxu0 0
        %358 = vmatprep.subr.bf16.mxu0 0
        %359 = vmatpush1.bf16.msra.mxu0 0
        %360 = vmatprep.subr.bf16.mxu0 0
        %361 = vmatpush1.bf16.msra.mxu0 0
        %362 = vmatprep.subr.bf16.mxu0 0
        %363 = vmatpush1.bf16.msra.mxu0 0
        %364 = vmatprep.subr.bf16.mxu0 0
        %365 = vmatpush1.bf16.msra.mxu0 0
        %366 = vmatprep.subr.bf16.mxu0 0
        %367 = vmatpush1.bf16.msra.mxu0 0
        %368 = vmatprep.subr.bf16.mxu0 0
        %369 = vmatpush1.bf16.msra.mxu0 0
        %370 = vmatprep.subr.bf16.mxu0 0
        %371 = vmatpush1.bf16.msra.mxu0 0
        %372 = vmatprep.mubr.bf16.mxu0 0
        %373 = vmatmul.mubr.bf16.gmra.mrb[0].mxu0 %v275
        %v374 = vpop.f32.mrb[0].mxu0
        %v375 = vadd.f32 0.0, %v374
        %v376 = vpop.f32.mrb[0].mxu0
        %v377 = vpop.f32.mrb[0].mxu0
        %v378 = vpop.f32.mrb[0].mxu0
        %379 = vdwg.mxu0
        %v380 = vld [vmem:[%s2] sm:$0x1]
        %v381 = vld [vmem:[%s2 + $0x1] sm:$0x1]
        %v382 = vld [vmem:[%s2 + $0x2] sm:$0x1]
        %v383 = vlaneseq
        %v384 = vshrl.u32 %v383, 7
        %v385 = vsub.s32 0, %v384
        %v386 = vrot.slane %v380, %v385
        %v387 = vmul.f32 %v375, %v386
        %v388 = vlaneseq
        %v389 = vshrl.u32 %v388, 7
        %v390 = vsub.s32 0, %v389
        %v391 = vrot.slane %v381, %v390
        %v392 = vadd.f32 %v387, %v391
        %v393 = vmul.f32 %v392, 0.1
        %v394 = vmax.f32 %v392, %v393
        %v395 = vpack.c.bf16 %v394, %v394
        %v396 = vld [vmem:[%s3] sm:$0xf]
        %v397 = vld [vmem:[%s3 + $0x4] sm:$0xf]
        %v398 = vld [vmem:[%s3 + $0x8] sm:$0xf]
        %v399 = vld [vmem:[%s3 + $0xc] sm:$0xf]
        %v400 = vld [vmem:[%s3 + $0x10] sm:$0xf]
        %v401 = vld [vmem:[%s3 + $0x14] sm:$0xf]
        %v402 = vld [vmem:[%s3 + $0x18] sm:$0xf]
        %v403 = vld [vmem:[%s3 + $0x1c] sm:$0xf]
        %v404 = vld [vmem:[%s3 + $0x20] sm:$0xf]
        %v405 = vld [vmem:[%s3 + $0x24] sm:$0xf]
        %v406 = vld [vmem:[%s3 + $0x28] sm:$0xf]
        %v407 = vld [vmem:[%s3 + $0x2c] sm:$0xf]
        %v408 = vld [vmem:[%s3 + $0x30] sm:$0xf]
        %v409 = vld [vmem:[%s3 + $0x34] sm:$0xf]
        %v410 = vld [vmem:[%s3 + $0x38] sm:$0xf]
        %v411 = vld [vmem:[%s3 + $0x3c] sm:$0xf]
        %v412 = vlaneseq
        %v413 = vshrl.u32 %v412, 7
        %v414 = vsub.s32 0, %v413
        %v415 = vrot.slane %v382, %v414
        %v432 = vunpack.c.l.b16 %v396
        %v433 = vunpack.c.l.b16 %v397
        %v434 = vunpack.c.l.b16 %v398
        %v435 = vunpack.c.l.b16 %v399
        %v436 = vunpack.c.l.b16 %v400
        %v437 = vunpack.c.l.b16 %v401
        %v438 = vunpack.c.l.b16 %v402
        %v439 = vunpack.c.l.b16 %v403
        %v440 = vunpack.c.l.b16 %v404
        %v441 = vunpack.c.l.b16 %v405
        %v442 = vunpack.c.l.b16 %v406
        %v443 = vunpack.c.l.b16 %v407
        %v444 = vunpack.c.l.b16 %v408
        %v445 = vunpack.c.l.b16 %v409
        %v446 = vunpack.c.l.b16 %v410
        %v447 = vunpack.c.l.b16 %v411
        %v448 = vpack.c.b16 %v433, %v432
        %v449 = vpack.c.b16 %v435, %v434
        %v450 = vpack.c.b16 %v437, %v436
        %v451 = vpack.c.b16 %v439, %v438
        %v452 = vpack.c.b16 %v441, %v440
        %v453 = vpack.c.b16 %v443, %v442
        %v454 = vpack.c.b16 %v445, %v444
        %v455 = vpack.c.b16 %v447, %v446
        %464 = vmatprep.subr.bf16.mxu0 0
        %465 = vmatpush1.bf16.msra.mxu0 %v448
        %466 = vmatprep.subr.bf16.mxu0 0
        %467 = vmatpush1.bf16.msra.mxu0 %v449
        %468 = vmatprep.subr.bf16.mxu0 0
        %469 = vmatpush1.bf16.msra.mxu0 %v450
        %470 = vmatprep.subr.bf16.mxu0 0
        %471 = vmatpush1.bf16.msra.mxu0 %v451
        %472 = vmatprep.subr.bf16.mxu0 0
        %473 = vmatpush1.bf16.msra.mxu0 %v452
        %474 = vmatprep.subr.bf16.mxu0 0
        %475 = vmatpush1.bf16.msra.mxu0 %v453
        %476 = vmatprep.subr.bf16.mxu0 0
        %477 = vmatpush1.bf16.msra.mxu0 %v454
        %478 = vmatprep.subr.bf16.mxu0 0
        %479 = vmatpush1.bf16.msra.mxu0 %v455
        %480 = vmatprep.subr.bf16.mxu0 0
        %481 = vmatpush1.bf16.msra.mxu0 0
        %482 = vmatprep.subr.bf16.mxu0 0
        %483 = vmatpush1.bf16.msra.mxu0 0
        %484 = vmatprep.subr.bf16.mxu0 0
        %485 = vmatpush1.bf16.msra.mxu0 0
        %486 = vmatprep.subr.bf16.mxu0 0
        %487 = vmatpush1.bf16.msra.mxu0 0
        %488 = vmatprep.subr.bf16.mxu0 0
        %489 = vmatpush1.bf16.msra.mxu0 0
        %490 = vmatprep.subr.bf16.mxu0 0
        %491 = vmatpush1.bf16.msra.mxu0 0
        %492 = vmatprep.subr.bf16.mxu0 0
        %493 = vmatpush1.bf16.msra.mxu0 0
        %494 = vmatprep.subr.bf16.mxu0 0
        %495 = vmatpush1.bf16.msra.mxu0 0
        %496 = vmatprep.mubr.bf16.mxu0 0
        %497 = vmatmul.mubr.bf16.gmra.mrb[0].mxu0 %v395
        %v498 = vpop.f32.mrb[0].mxu0
        %v499 = vadd.f32 %v415, %v498
        %v500 = vpop.f32.mrb[0].mxu0
        %v501 = vpop.f32.mrb[0].mxu0
        %v502 = vpop.f32.mrb[0].mxu0
        %503 = vdwg.mxu0
        %v504 = vmul.f32 %v499, 0.1
        %v505 = vmax.f32 %v499, %v504
        %v506 = vpack.c.bf16 %v505, %v505
        %v507 = vld [vmem:[%s4] sm:$0xf]
        %v508 = vld [vmem:[%s4 + $0x4] sm:$0xf]
        %v509 = vld [vmem:[%s4 + $0x8] sm:$0xf]
        %v510 = vld [vmem:[%s4 + $0xc] sm:$0xf]
        %v511 = vld [vmem:[%s4 + $0x10] sm:$0xf]
        %v512 = vld [vmem:[%s4 + $0x14] sm:$0xf]
        %v513 = vld [vmem:[%s4 + $0x18] sm:$0xf]
        %v514 = vld [vmem:[%s4 + $0x1c] sm:$0xf]
        %v515 = vld [vmem:[%s4 + $0x20] sm:$0xf]
        %v516 = vld [vmem:[%s4 + $0x24] sm:$0xf]
        %v517 = vld [vmem:[%s4 + $0x28] sm:$0xf]
        %v518 = vld [vmem:[%s4 + $0x2c] sm:$0xf]
        %v519 = vld [vmem:[%s4 + $0x30] sm:$0xf]
        %v520 = vld [vmem:[%s4 + $0x34] sm:$0xf]
        %v521 = vld [vmem:[%s4 + $0x38] sm:$0xf]
        %v522 = vld [vmem:[%s4 + $0x3c] sm:$0xf]
        %v523 = vld [vmem:[%s5] sm:$0xf]
        %v524 = vld [vmem:[%s5 + $0x4] sm:$0xf]
        %v525 = vld [vmem:[%s5 + $0x8] sm:$0xf]
        %v526 = vld [vmem:[%s5 + $0xc] sm:$0xf]
        %v527 = vld [vmem:[%s5 + $0x10] sm:$0xf]
        %v528 = vld [vmem:[%s5 + $0x14] sm:$0xf]
        %v529 = vld [vmem:[%s5 + $0x18] sm:$0xf]
        %v530 = vld [vmem:[%s5 + $0x1c] sm:$0xf]
        %v531 = vld [vmem:[%s5 + $0x20] sm:$0xf]
        %v532 = vld [vmem:[%s5 + $0x24] sm:$0xf]
        %v533 = vld [vmem:[%s5 + $0x28] sm:$0xf]
        %v534 = vld [vmem:[%s5 + $0x2c] sm:$0xf]
        %v535 = vld [vmem:[%s5 + $0x30] sm:$0xf]
        %v536 = vld [vmem:[%s5 + $0x34] sm:$0xf]
        %v537 = vld [vmem:[%s5 + $0x38] sm:$0xf]
        %v538 = vld [vmem:[%s5 + $0x3c] sm:$0xf]
        %v555 = vunpack.c.l.b16 %v523
        %v556 = vunpack.c.l.b16 %v524
        %v557 = vunpack.c.l.b16 %v525
        %v558 = vunpack.c.l.b16 %v526
        %v559 = vunpack.c.l.b16 %v527
        %v560 = vunpack.c.l.b16 %v528
        %v561 = vunpack.c.l.b16 %v529
        %v562 = vunpack.c.l.b16 %v530
        %v563 = vunpack.c.l.b16 %v531
        %v564 = vunpack.c.l.b16 %v532
        %v565 = vunpack.c.l.b16 %v533
        %v566 = vunpack.c.l.b16 %v534
        %v567 = vunpack.c.l.b16 %v535
        %v568 = vunpack.c.l.b16 %v536
        %v569 = vunpack.c.l.b16 %v537
        %v570 = vunpack.c.l.b16 %v538
        %v571 = vpack.c.b16 %v556, %v555
        %v572 = vpack.c.b16 %v558, %v557
        %v573 = vpack.c.b16 %v560, %v559
        %v574 = vpack.c.b16 %v562, %v561
        %v575 = vpack.c.b16 %v564, %v563
        %v576 = vpack.c.b16 %v566, %v565
        %v577 = vpack.c.b16 %v568, %v567
        %v578 = vpack.c.b16 %v570, %v569
        %587 = vmatprep.subr.bf16.mxu0 0
        %588 = vmatpush1.bf16.msra.mxu0 %v571
        %589 = vmatprep.subr.bf16.mxu0 0
        %590 = vmatpush1.bf16.msra.mxu0 %v572
        %591 = vmatprep.subr.bf16.mxu0 0
        %592 = vmatpush1.bf16.msra.mxu0 %v573
        %593 = vmatprep.subr.bf16.mxu0 0
        %594 = vmatpush1.bf16.msra.mxu0 %v574
        %595 = vmatprep.subr.bf16.mxu0 0
        %596 = vmatpush1.bf16.msra.mxu0 %v575
        %597 = vmatprep.subr.bf16.mxu0 0
        %598 = vmatpush1.bf16.msra.mxu0 %v576
        %599 = vmatprep.subr.bf16.mxu0 0
        %600 = vmatpush1.bf16.msra.mxu0 %v577
        %601 = vmatprep.subr.bf16.mxu0 0
        %602 = vmatpush1.bf16.msra.mxu0 %v578
        %603 = vmatprep.subr.bf16.mxu0 0
        %604 = vmatpush1.bf16.msra.mxu0 0
        %605 = vmatprep.subr.bf16.mxu0 0
        %606 = vmatpush1.bf16.msra.mxu0 0
        %607 = vmatprep.subr.bf16.mxu0 0
        %608 = vmatpush1.bf16.msra.mxu0 0
        %609 = vmatprep.subr.bf16.mxu0 0
        %610 = vmatpush1.bf16.msra.mxu0 0
        %611 = vmatprep.subr.bf16.mxu0 0
        %612 = vmatpush1.bf16.msra.mxu0 0
        %613 = vmatprep.subr.bf16.mxu0 0
        %614 = vmatpush1.bf16.msra.mxu0 0
        %615 = vmatprep.subr.bf16.mxu0 0
        %616 = vmatpush1.bf16.msra.mxu0 0
        %617 = vmatprep.subr.bf16.mxu0 0
        %618 = vmatpush1.bf16.msra.mxu0 0
        %619 = vmatprep.mubr.bf16.mxu0 0
        %620 = vmatmul.mubr.bf16.gmra.mrb[0].mxu0 %v275
        %v621 = vpop.f32.mrb[0].mxu0
        %v622 = vadd.f32 0.0, %v621
        %v623 = vpop.f32.mrb[0].mxu0
        %v624 = vpop.f32.mrb[0].mxu0
        %v625 = vpop.f32.mrb[0].mxu0
        %626 = vdwg.mxu0
        %v643 = vunpack.c.l.b16 %v507
        %v644 = vunpack.c.l.b16 %v508
        %v645 = vunpack.c.l.b16 %v509
        %v646 = vunpack.c.l.b16 %v510
        %v647 = vunpack.c.l.b16 %v511
        %v648 = vunpack.c.l.b16 %v512
        %v649 = vunpack.c.l.b16 %v513
        %v650 = vunpack.c.l.b16 %v514
        %v651 = vunpack.c.l.b16 %v515
        %v652 = vunpack.c.l.b16 %v516
        %v653 = vunpack.c.l.b16 %v517
        %v654 = vunpack.c.l.b16 %v518
        %v655 = vunpack.c.l.b16 %v519
        %v656 = vunpack.c.l.b16 %v520
        %v657 = vunpack.c.l.b16 %v521
        %v658 = vunpack.c.l.b16 %v522
        %v659 = vpack.c.b16 %v644, %v643
        %v660 = vpack.c.b16 %v646, %v645
        %v661 = vpack.c.b16 %v648, %v647
        %v662 = vpack.c.b16 %v650, %v649
        %v663 = vpack.c.b16 %v652, %v651
        %v664 = vpack.c.b16 %v654, %v653
        %v665 = vpack.c.b16 %v656, %v655
        %v666 = vpack.c.b16 %v658, %v657
        %675 = vmatprep.subr.bf16.mxu0 0
        %676 = vmatpush1.bf16.msra.mxu0 %v659
        %677 = vmatprep.subr.bf16.mxu0 0
        %678 = vmatpush1.bf16.msra.mxu0 %v660
        %679 = vmatprep.subr.bf16.mxu0 0
        %680 = vmatpush1.bf16.msra.mxu0 %v661
        %681 = vmatprep.subr.bf16.mxu0 0
        %682 = vmatpush1.bf16.msra.mxu0 %v662
        %683 = vmatprep.subr.bf16.mxu0 0
        %684 = vmatpush1.bf16.msra.mxu0 %v663
        %685 = vmatprep.subr.bf16.mxu0 0
        %686 = vmatpush1.bf16.msra.mxu0 %v664
        %687 = vmatprep.subr.bf16.mxu0 0
        %688 = vmatpush1.bf16.msra.mxu0 %v665
        %689 = vmatprep.subr.bf16.mxu0 0
        %690 = vmatpush1.bf16.msra.mxu0 %v666
        %691 = vmatprep.subr.bf16.mxu0 0
        %692 = vmatpush1.bf16.msra.mxu0 0
        %693 = vmatprep.subr.bf16.mxu0 0
        %694 = vmatpush1.bf16.msra.mxu0 0
        %695 = vmatprep.subr.bf16.mxu0 0
        %696 = vmatpush1.bf16.msra.mxu0 0
        %697 = vmatprep.subr.bf16.mxu0 0
        %698 = vmatpush1.bf16.msra.mxu0 0
        %699 = vmatprep.subr.bf16.mxu0 0
        %700 = vmatpush1.bf16.msra.mxu0 0
        %701 = vmatprep.subr.bf16.mxu0 0
        %702 = vmatpush1.bf16.msra.mxu0 0
        %703 = vmatprep.subr.bf16.mxu0 0
        %704 = vmatpush1.bf16.msra.mxu0 0
        %705 = vmatprep.subr.bf16.mxu0 0
        %706 = vmatpush1.bf16.msra.mxu0 0
        %707 = vmatprep.mubr.bf16.mxu0 0
        %708 = vmatmul.mubr.bf16.gmra.mrb[0].mxu0 %v506
        %v709 = vpop.f32.mrb[0].mxu0
        %v710 = vadd.f32 %v622, %v709
        %v711 = vpop.f32.mrb[0].mxu0
        %v712 = vpop.f32.mrb[0].mxu0
        %v713 = vpop.f32.mrb[0].mxu0
        %714 = vdwg.mxu0
        %v715 = vld [vmem:[%s6] sm:$0x1]
        %v717 = vlaneseq
        %v718 = vshrl.u32 %v717, 7
        %v719 = vsub.s32 0, %v718
        %v720 = vrot.slane %v715, %v719
        %v722 = vadd.f32 %v710, %v720
        %723 = vst [vmem:[%s269] sm:$0xff] %v722
        %s724 = sand.u32 %s181, 1
        %s725 = scalar_lea.sflag [#allocation3], %s724
        %s726 = sand.u32 %s181, 1
        %s727 = smul.addr %s726, 8
        %s728 = scalar_lea.vmem [#allocation2], %s727
        // Predicated region
        $region49: #{residual_block_forward.3} parent=47 // pred_check
          %p729 = pneg %p191
        $region50: #{residual_block_forward.3} parent=47 // pred_check_branch
          %731 = sbr.rel (%p729) target = $region52
        $region51: #{residual_block_forward.3} parent=47 // pred_region
          %s733 = ssub.s32 128, 128
          %734 = vsyncadd %s725, %s733
          %s735 = smul.addr %s21, 128
          %s736 = scalar_lea.hbm %s7, %s735
          %s738 = sshll.u32 %s728, 4
          %s739 = int_to_ptr.vmem [resolvable:$true] %s738
          %741 = dma.vmem_to_hbm [thread:$0]  %s739, 128, %s736, %s725
        $region52: #{residual_block_forward.3} parent=47 // pred_fallthru
          _
      $region48: #{residual_block_forward.3} parent=5 // pred_fallthru
        _
      %p742 = scmp.le.s32.totalorder 2, %s16
      // Predicated region
      $region53: #{residual_block_forward.3} parent=5 // pred_check
        %p743 = pneg %p742
      $region54: #{residual_block_forward.3} parent=5 // pred_check_branch
        %745 = sbr.rel (%p743) target = $region56
      $region55: #{residual_block_forward.3} parent=5 // pred_region
        %s746 = ssub.s32 %s16, 2
        // Predicated region
        $region57: #{residual_block_forward.3} parent=55 // pred_check
          %p747 = pneg %p197
        $region58: #{residual_block_forward.3} parent=55 // pred_check_branch
          %749 = sbr.rel (%p747) target = $region60
        $region59: #{residual_block_forward.3} parent=55 // pred_region
          %s750 = sand.u32 %s182, 1
          %s751 = scalar_lea.sflag [#allocation3], %s750
          %s752 = sand.u32 %s182, 1
          %s753 = smul.addr %s752, 8
          %s754 = scalar_lea.vmem [#allocation2], %s753
          %755 = dma.done %s751, 128
        $region60: #{residual_block_forward.3} parent=55 // pred_fallthru
          _
      $region56: #{residual_block_forward.3} parent=5 // pred_fallthru
        _
    $region6: #{residual_block_forward.3} parent=1 // loop_footer
      %s20 = sadd.s32 1, %s16
    $region7: #{residual_block_forward.3} parent=1 // loop_footer_branch
      %15 = sbr.rel target = $region3
    $region8: #{residual_block_forward.3} parent=1 // loop_exit
      _
    %756 = vsyncpa [#allocation3], 1
    %s757 = scalar_lea.sflag [#allocation3], 1
    %758 = vsyncpa %s757, 1

</llo_original>
